<compile_context>
chip_gen: v6e
topology: v6e:2x2x1
jax: 0.10.0
libtpu: 0.0.40
codegen_flags: <defaults>
</compile_context>

<pallas_src>
import functools

import jax
import jax.numpy as jnp
from jax.experimental import pallas as pl
from jax.experimental.pallas import tpu as pltpu


def _round_up(x, m):
    return ((x + m - 1) // m) * m


def _choose_packing(num_edges, hidden):
    """Edges packed per output row so the matmul result is 128-lane dense."""
    if hidden < 128 and 128 % hidden == 0:
        g = 128 // hidden
        if num_edges % g == 0:
            return g
    return 1


def make_edge_table(emb_table, lin_w, lin_b, n_scalar, *, G=1):
    """Augmented (block-diagonal) weight table; build once, reuse per step.

    One K x H block is [ Emb (C,H) ; lin_w row ; n_scalar*lin_b row ; 0-pad ],
    K = round_up(C+2, 8) (8-aligned MXU contraction operand).  For G > 1 the
    block repeats along the diagonal so G edges share one lane-dense matmul.
    """
    C, H = emb_table.shape
    K = _round_up(C + 2, 8)
    blk = jnp.zeros((K, H), jnp.float32)
    blk = blk.at[:C].set(emb_table.astype(jnp.float32))
    blk = blk.at[C].set(lin_w.reshape(H).astype(jnp.float32))
    blk = blk.at[C + 1].set(float(n_scalar) * lin_b.reshape(H).astype(jnp.float32))
    if G == 1:
        return blk
    table = jnp.zeros((G * K, G * H), jnp.float32)
    for g in range(G):
        table = table.at[g * K:(g + 1) * K, g * H:(g + 1) * H].set(blk)
    return table


def _edge_embed_kernel(feat_ref, table_ref, o_ref, *, G, F, C, K):
    # feat_ref : (TP, G*F)  f32 — G edges per row, edge g in lanes [g*F,(g+1)*F)
    # table_ref: (G*K, G*H) f32 — block-diagonal augmented table
    # o_ref    : (TP, G*H)  out_dtype
    feat = feat_ref[...]
    tp = feat.shape[0]
    col = jax.lax.broadcasted_iota(jnp.int32, (tp, G * K), 1)
    lhs = jnp.zeros((tp, G * K), jnp.float32)
    for g in range(G):                       # static, tiny unroll
        fb, kb = g * F, g * K
        # f32 -> i32 index cast: exact for small contact vocabularies (C=8).
        idx0 = feat[:, fb + 0:fb + 1].astype(jnp.int32)          # (TP, 1)
        idx1 = feat[:, fb + 1:fb + 2].astype(jnp.int32)          # (TP, 1)
        s = jnp.sum(feat[:, fb + 2:fb + F], axis=1, keepdims=True)  # (TP, 1)
        lhs = (lhs
               + (col == kb + idx0).astype(jnp.float32)          # one_hot(idx0)
               + (col == kb + idx1).astype(jnp.float32)          # one_hot(idx1)
               + jnp.where(col == kb + C, s, 0.0)                # summed scalars
               + (col == kb + C + 1).astype(jnp.float32))        # -> n*b bias row
    o_ref[...] = jnp.dot(lhs, table_ref[...],
                         precision=jax.lax.Precision.HIGHEST,
                         preferred_element_type=jnp.float32).astype(o_ref.dtype)


def edge_init_embedding_forward(edge_feat, emb_table, lin_w, lin_b, batch_size,
                                *, table=None, tile_e=None,
                                out_dtype=jnp.float32):
    """edge_feat: (E, F) with cols 0:2 holding integer indices (as floats).

    emb_table: (C, H), lin_w: (H, 1) [torch Linear(1,H) weight], lin_b: (H,).
    Optionally pass a prebuilt `table` from make_edge_table (hoisted out of
    the per-step path).  Returns (batch_size, E, H) — valid for batch_size==1,
    matching the reference `x.view(batch_size, x.size(0), hidden)`.
    """
    E, F = edge_feat.shape
    C, H = emb_table.shape
    n_scalar = F - 2
    K = _round_up(C + 2, 8)

    G = _choose_packing(E, H)
    if table is None:
        table = make_edge_table(emb_table, lin_w, lin_b, n_scalar, G=G)
    assert table.shape == (G * K, G * H), "prebuilt table has wrong packing"

    # Free row-major reshape: pack G edges per row (G == 1 -> same shape).
    E_p = E // G
    feat = edge_feat.astype(jnp.float32).reshape(E_p, G * F)

    # Tile selection (packed rows per grid step). Big tiles amortize the
    # ~0.35us per-step pipeline overhead; >= 2 (even) steps once large enough
    # so a 2-TensorCore part can shard the "parallel" axis.
    if tile_e is None:
        cap = 4096
        if E_p <= 1024:
            n_steps = 1
        elif E_p <= 2 * cap:
            n_steps = 2
        else:
            n_steps = pl.cdiv(E_p, cap)
            n_steps += n_steps % 2
        tile_p = _round_up(pl.cdiv(E_p, n_steps), 8)
    else:
        tile_p = _round_up(min(max(pl.cdiv(tile_e, G), 8), _round_up(E_p, 8)), 8)

    grid = (pl.cdiv(E_p, tile_p),)           # ragged last block is masked

    out = pl.pallas_call(
        functools.partial(_edge_embed_kernel, G=G, F=F, C=C, K=K),
        out_shape=jax.ShapeDtypeStruct((E_p, G * H), out_dtype),
        grid_spec=pltpu.PrefetchScalarGridSpec(
            num_scalar_prefetch=0,
            grid=grid,
            in_specs=[
                pl.BlockSpec((tile_p, G * F), lambda i: (i, 0)),
                # Tiny resident table; constant block index -> no re-DMA.
                pl.BlockSpec((G * K, G * H), lambda i: (0, 0)),
            ],
            out_specs=pl.BlockSpec((tile_p, G * H), lambda i: (i, 0)),
        ),
        compiler_params=pltpu.CompilerParams(
            dimension_semantics=("parallel",),
            vmem_limit_bytes=32 * 1024 * 1024),
    )(feat, table)

    # Free row-major reshape back to per-edge rows.
    return out.reshape(batch_size, E, H)


def _reference(edge_feat, emb_table, lin_w, lin_b, batch_size):
    lin = edge_feat[:, 2:].astype(jnp.float32)[..., None]        # (E, F-2, 1)
    idx = edge_feat[:, :2].astype(jnp.int32)                     # (E, 2)
    lin_out = lin * lin_w.reshape(1, 1, -1) + lin_b.reshape(1, 1, -1)
    emb_out = emb_table[idx]                                     # (E, 2, H)
    x = jnp.concatenate([lin_out, emb_out], axis=1)
    x = jnp.sum(x, axis=1)
    return x.reshape(batch_size, x.shape[0], -1)


if __name__ == "__main__":
    batch_size = 1
    hidden_size = 32
    edge_contact_dim = 8
    F = 6                      # 2 index cols + 4 scalar cols

    key = jax.random.PRNGKey(0)
    k_emb, k_w, k_b, k_data = jax.random.split(key, 4)

    emb_table = jax.random.normal(k_emb, (edge_contact_dim, hidden_size),
                                  dtype=jnp.float32)
    lin_w = jax.random.normal(k_w, (hidden_size, 1), dtype=jnp.float32)
    lin_b = jax.random.normal(k_b, (hidden_size,), dtype=jnp.float32) * 0.1

    # TODO(synk): dgl.load_graphs file I/O has no Pallas equivalent; the edge
    # feature tensor is synthesized in-script instead.
    def make_edge_feat(rng, E):
        k_idx, k_lin = jax.random.split(rng)
        idx_cols = jax.random.randint(k_idx, (E, 2), 0, edge_contact_dim)
        lin_cols = jax.random.normal(k_lin, (E, F - 2), dtype=jnp.float32)
        return jnp.concatenate([idx_cols.astype(jnp.float32), lin_cols], axis=1)

    # Hoisted table construction (built once, reused across calls).
    table_g4 = make_edge_table(emb_table, lin_w, lin_b, F - 2,
                               G=_choose_packing(128, hidden_size))

    cases = [
        (128, table_g4),   # lane-dense packed path (G=4), exact blocks
        (252, None),       # packed path with ragged last block (63 packed rows)
        (125, None),       # unpacked fallback (E % 4 != 0), ragged last block
    ]
    for i, (E, tbl) in enumerate(cases):
        edge_feat = make_edge_feat(jax.random.fold_in(k_data, i), E)
        out = edge_init_embedding_forward(edge_feat, emb_table, lin_w, lin_b,
                                          batch_size, table=tbl)
        out = jax.block_until_ready(out)
        ref = _reference(edge_feat, emb_table, lin_w, lin_b, batch_size)
        assert out.shape == (batch_size, E, hidden_size), out.shape
        assert jnp.allclose(out, ref, atol=1e-3, rtol=1e-3), (
            f"mismatch at E={E}, max err {jnp.max(jnp.abs(out - ref)):.3e}")

    print("KERNEL_OK")
</pallas_src>

<mosaic_0001>
module attributes {stable_mosaic.version = 11 : i64} {
  func.func @_edge_embed_kernel(%arg0: i32, %arg1: memref<32x24xf32, #tpu.memory_space<vmem>>, %arg2: memref<64x128xf32, #tpu.memory_space<vmem>>, %arg3: memref<32x128xf32, #tpu.memory_space<vmem>>) attributes {dimension_semantics = [#tpu.dimension_semantics<parallel>], iteration_bounds = array<i64: 1>, scalar_prefetch = 0 : i64, scratch_operands = 0 : i64, tpu.core_type = #tpu.core_type<tc>, window_params = [{transform_indices = @transform_0, window_bounds = array<i64: 32, 24>}, {pipeline_mode = #tpu.pipeline_mode<synchronous>, transform_indices = @transform_1, window_bounds = array<i64: 64, 128>}, {transform_indices = @transform_2, window_bounds = array<i64: 32, 128>}]} {
    %c0 = arith.constant 0 : index
    %c0_0 = arith.constant 0 : index
    %0 = vector.load %arg1[%c0, %c0_0] : memref<32x24xf32, #tpu.memory_space<vmem>>, vector<32x24xf32>
    %1 = tpu.iota {dimensions = array<i32: 1>} : vector<32x64xi32>
    %cst = arith.constant 0.000000e+00 : f32
    %2 = vector.broadcast %cst : f32 to vector<32x64xf32>
    %3 = vector.extract_strided_slice %0 {offsets = [0, 0], sizes = [32, 1], strides = [1, 1]} : vector<32x24xf32> to vector<32x1xf32>
    %4 = arith.fptosi %3 : vector<32x1xf32> to vector<32x1xi32>
    %5 = vector.extract_strided_slice %0 {offsets = [0, 1], sizes = [32, 1], strides = [1, 1]} : vector<32x24xf32> to vector<32x1xf32>
    %6 = arith.fptosi %5 : vector<32x1xf32> to vector<32x1xi32>
    %7 = vector.extract_strided_slice %0 {offsets = [0, 2], sizes = [32, 4], strides = [1, 1]} : vector<32x24xf32> to vector<32x4xf32>
    %cst_1 = arith.constant dense<0.000000e+00> : vector<32xf32>
    %8 = vector.multi_reduction <add>, %7, %cst_1 [1] : vector<32x4xf32> to vector<32xf32>
    %9 = vector.shape_cast %8 : vector<32xf32> to vector<32x1xf32>
    %c0_i32 = arith.constant 0 : i32
    %10 = vector.broadcast %c0_i32 : i32 to vector<32x1xi32>
    %11 = arith.addi %10, %4 : vector<32x1xi32>
    %12 = vector.broadcast %11 : vector<32x1xi32> to vector<32x64xi32>
    %13 = arith.cmpi eq, %1, %12 : vector<32x64xi32>
    %14 = arith.extui %13 : vector<32x64xi1> to vector<32x64xi32>
    %15 = arith.sitofp %14 : vector<32x64xi32> to vector<32x64xf32>
    %16 = arith.addf %2, %15 : vector<32x64xf32>
    %c0_i32_2 = arith.constant 0 : i32
    %17 = vector.broadcast %c0_i32_2 : i32 to vector<32x1xi32>
    %18 = arith.addi %17, %6 : vector<32x1xi32>
    %19 = vector.broadcast %18 : vector<32x1xi32> to vector<32x64xi32>
    %20 = arith.cmpi eq, %1, %19 : vector<32x64xi32>
    %21 = arith.extui %20 : vector<32x64xi1> to vector<32x64xi32>
    %22 = arith.sitofp %21 : vector<32x64xi32> to vector<32x64xf32>
    %23 = arith.addf %16, %22 : vector<32x64xf32>
    %c8_i32 = arith.constant 8 : i32
    %24 = vector.broadcast %c8_i32 : i32 to vector<32x64xi32>
    %25 = arith.cmpi eq, %1, %24 : vector<32x64xi32>
    %cst_3 = arith.constant 0.000000e+00 : f32
    %26 = vector.shape_cast %9 : vector<32x1xf32> to vector<32x1xf32>
    %27 = vector.broadcast %26 : vector<32x1xf32> to vector<32x64xf32>
    %28 = vector.broadcast %cst_3 : f32 to vector<32x64xf32>
    %29 = arith.select %25, %27, %28 : vector<32x64xi1>, vector<32x64xf32>
    %30 = arith.addf %23, %29 : vector<32x64xf32>
    %c9_i32 = arith.constant 9 : i32
    %31 = vector.broadcast %c9_i32 : i32 to vector<32x64xi32>
    %32 = arith.cmpi eq, %1, %31 : vector<32x64xi32>
    %33 = arith.extui %32 : vector<32x64xi1> to vector<32x64xi32>
    %34 = arith.sitofp %33 : vector<32x64xi32> to vector<32x64xf32>
    %35 = arith.addf %30, %34 : vector<32x64xf32>
    %36 = vector.extract_strided_slice %0 {offsets = [0, 6], sizes = [32, 1], strides = [1, 1]} : vector<32x24xf32> to vector<32x1xf32>
    %37 = arith.fptosi %36 : vector<32x1xf32> to vector<32x1xi32>
    %38 = vector.extract_strided_slice %0 {offsets = [0, 7], sizes = [32, 1], strides = [1, 1]} : vector<32x24xf32> to vector<32x1xf32>
    %39 = arith.fptosi %38 : vector<32x1xf32> to vector<32x1xi32>
    %40 = vector.extract_strided_slice %0 {offsets = [0, 8], sizes = [32, 4], strides = [1, 1]} : vector<32x24xf32> to vector<32x4xf32>
    %cst_4 = arith.constant dense<0.000000e+00> : vector<32xf32>
    %41 = vector.multi_reduction <add>, %40, %cst_4 [1] : vector<32x4xf32> to vector<32xf32>
    %42 = vector.shape_cast %41 : vector<32xf32> to vector<32x1xf32>
    %c16_i32 = arith.constant 16 : i32
    %43 = vector.broadcast %c16_i32 : i32 to vector<32x1xi32>
    %44 = arith.addi %43, %37 : vector<32x1xi32>
    %45 = vector.broadcast %44 : vector<32x1xi32> to vector<32x64xi32>
    %46 = arith.cmpi eq, %1, %45 : vector<32x64xi32>
    %47 = arith.extui %46 : vector<32x64xi1> to vector<32x64xi32>
    %48 = arith.sitofp %47 : vector<32x64xi32> to vector<32x64xf32>
    %49 = arith.addf %35, %48 : vector<32x64xf32>
    %c16_i32_5 = arith.constant 16 : i32
    %50 = vector.broadcast %c16_i32_5 : i32 to vector<32x1xi32>
    %51 = arith.addi %50, %39 : vector<32x1xi32>
    %52 = vector.broadcast %51 : vector<32x1xi32> to vector<32x64xi32>
    %53 = arith.cmpi eq, %1, %52 : vector<32x64xi32>
    %54 = arith.extui %53 : vector<32x64xi1> to vector<32x64xi32>
    %55 = arith.sitofp %54 : vector<32x64xi32> to vector<32x64xf32>
    %56 = arith.addf %49, %55 : vector<32x64xf32>
    %c24_i32 = arith.constant 24 : i32
    %57 = vector.broadcast %c24_i32 : i32 to vector<32x64xi32>
    %58 = arith.cmpi eq, %1, %57 : vector<32x64xi32>
    %cst_6 = arith.constant 0.000000e+00 : f32
    %59 = vector.shape_cast %42 : vector<32x1xf32> to vector<32x1xf32>
    %60 = vector.broadcast %59 : vector<32x1xf32> to vector<32x64xf32>
    %61 = vector.broadcast %cst_6 : f32 to vector<32x64xf32>
    %62 = arith.select %58, %60, %61 : vector<32x64xi1>, vector<32x64xf32>
    %63 = arith.addf %56, %62 : vector<32x64xf32>
    %c25_i32 = arith.constant 25 : i32
    %64 = vector.broadcast %c25_i32 : i32 to vector<32x64xi32>
    %65 = arith.cmpi eq, %1, %64 : vector<32x64xi32>
    %66 = arith.extui %65 : vector<32x64xi1> to vector<32x64xi32>
    %67 = arith.sitofp %66 : vector<32x64xi32> to vector<32x64xf32>
    %68 = arith.addf %63, %67 : vector<32x64xf32>
    %69 = vector.extract_strided_slice %0 {offsets = [0, 12], sizes = [32, 1], strides = [1, 1]} : vector<32x24xf32> to vector<32x1xf32>
    %70 = arith.fptosi %69 : vector<32x1xf32> to vector<32x1xi32>
    %71 = vector.extract_strided_slice %0 {offsets = [0, 13], sizes = [32, 1], strides = [1, 1]} : vector<32x24xf32> to vector<32x1xf32>
    %72 = arith.fptosi %71 : vector<32x1xf32> to vector<32x1xi32>
    %73 = vector.extract_strided_slice %0 {offsets = [0, 14], sizes = [32, 4], strides = [1, 1]} : vector<32x24xf32> to vector<32x4xf32>
    %cst_7 = arith.constant dense<0.000000e+00> : vector<32xf32>
    %74 = vector.multi_reduction <add>, %73, %cst_7 [1] : vector<32x4xf32> to vector<32xf32>
    %75 = vector.shape_cast %74 : vector<32xf32> to vector<32x1xf32>
    %c32_i32 = arith.constant 32 : i32
    %76 = vector.broadcast %c32_i32 : i32 to vector<32x1xi32>
    %77 = arith.addi %76, %70 : vector<32x1xi32>
    %78 = vector.broadcast %77 : vector<32x1xi32> to vector<32x64xi32>
    %79 = arith.cmpi eq, %1, %78 : vector<32x64xi32>
    %80 = arith.extui %79 : vector<32x64xi1> to vector<32x64xi32>
    %81 = arith.sitofp %80 : vector<32x64xi32> to vector<32x64xf32>
    %82 = arith.addf %68, %81 : vector<32x64xf32>
    %c32_i32_8 = arith.constant 32 : i32
    %83 = vector.broadcast %c32_i32_8 : i32 to vector<32x1xi32>
    %84 = arith.addi %83, %72 : vector<32x1xi32>
    %85 = vector.broadcast %84 : vector<32x1xi32> to vector<32x64xi32>
    %86 = arith.cmpi eq, %1, %85 : vector<32x64xi32>
    %87 = arith.extui %86 : vector<32x64xi1> to vector<32x64xi32>
    %88 = arith.sitofp %87 : vector<32x64xi32> to vector<32x64xf32>
    %89 = arith.addf %82, %88 : vector<32x64xf32>
    %c40_i32 = arith.constant 40 : i32
    %90 = vector.broadcast %c40_i32 : i32 to vector<32x64xi32>
    %91 = arith.cmpi eq, %1, %90 : vector<32x64xi32>
    %cst_9 = arith.constant 0.000000e+00 : f32
    %92 = vector.shape_cast %75 : vector<32x1xf32> to vector<32x1xf32>
    %93 = vector.broadcast %92 : vector<32x1xf32> to vector<32x64xf32>
    %94 = vector.broadcast %cst_9 : f32 to vector<32x64xf32>
    %95 = arith.select %91, %93, %94 : vector<32x64xi1>, vector<32x64xf32>
    %96 = arith.addf %89, %95 : vector<32x64xf32>
    %c41_i32 = arith.constant 41 : i32
    %97 = vector.broadcast %c41_i32 : i32 to vector<32x64xi32>
    %98 = arith.cmpi eq, %1, %97 : vector<32x64xi32>
    %99 = arith.extui %98 : vector<32x64xi1> to vector<32x64xi32>
    %100 = arith.sitofp %99 : vector<32x64xi32> to vector<32x64xf32>
    %101 = arith.addf %96, %100 : vector<32x64xf32>
    %102 = vector.extract_strided_slice %0 {offsets = [0, 18], sizes = [32, 1], strides = [1, 1]} : vector<32x24xf32> to vector<32x1xf32>
    %103 = arith.fptosi %102 : vector<32x1xf32> to vector<32x1xi32>
    %104 = vector.extract_strided_slice %0 {offsets = [0, 19], sizes = [32, 1], strides = [1, 1]} : vector<32x24xf32> to vector<32x1xf32>
    %105 = arith.fptosi %104 : vector<32x1xf32> to vector<32x1xi32>
    %106 = vector.extract_strided_slice %0 {offsets = [0, 20], sizes = [32, 4], strides = [1, 1]} : vector<32x24xf32> to vector<32x4xf32>
    %cst_10 = arith.constant dense<0.000000e+00> : vector<32xf32>
    %107 = vector.multi_reduction <add>, %106, %cst_10 [1] : vector<32x4xf32> to vector<32xf32>
    %108 = vector.shape_cast %107 : vector<32xf32> to vector<32x1xf32>
    %c48_i32 = arith.constant 48 : i32
    %109 = vector.broadcast %c48_i32 : i32 to vector<32x1xi32>
    %110 = arith.addi %109, %103 : vector<32x1xi32>
    %111 = vector.broadcast %110 : vector<32x1xi32> to vector<32x64xi32>
    %112 = arith.cmpi eq, %1, %111 : vector<32x64xi32>
    %113 = arith.extui %112 : vector<32x64xi1> to vector<32x64xi32>
    %114 = arith.sitofp %113 : vector<32x64xi32> to vector<32x64xf32>
    %115 = arith.addf %101, %114 : vector<32x64xf32>
    %c48_i32_11 = arith.constant 48 : i32
    %116 = vector.broadcast %c48_i32_11 : i32 to vector<32x1xi32>
    %117 = arith.addi %116, %105 : vector<32x1xi32>
    %118 = vector.broadcast %117 : vector<32x1xi32> to vector<32x64xi32>
    %119 = arith.cmpi eq, %1, %118 : vector<32x64xi32>
    %120 = arith.extui %119 : vector<32x64xi1> to vector<32x64xi32>
    %121 = arith.sitofp %120 : vector<32x64xi32> to vector<32x64xf32>
    %122 = arith.addf %115, %121 : vector<32x64xf32>
    %c56_i32 = arith.constant 56 : i32
    %123 = vector.broadcast %c56_i32 : i32 to vector<32x64xi32>
    %124 = arith.cmpi eq, %1, %123 : vector<32x64xi32>
    %cst_12 = arith.constant 0.000000e+00 : f32
    %125 = vector.shape_cast %108 : vector<32x1xf32> to vector<32x1xf32>
    %126 = vector.broadcast %125 : vector<32x1xf32> to vector<32x64xf32>
    %127 = vector.broadcast %cst_12 : f32 to vector<32x64xf32>
    %128 = arith.select %124, %126, %127 : vector<32x64xi1>, vector<32x64xf32>
    %129 = arith.addf %122, %128 : vector<32x64xf32>
    %c57_i32 = arith.constant 57 : i32
    %130 = vector.broadcast %c57_i32 : i32 to vector<32x64xi32>
    %131 = arith.cmpi eq, %1, %130 : vector<32x64xi32>
    %132 = arith.extui %131 : vector<32x64xi1> to vector<32x64xi32>
    %133 = arith.sitofp %132 : vector<32x64xi32> to vector<32x64xf32>
    %134 = arith.addf %129, %133 : vector<32x64xf32>
    %c0_13 = arith.constant 0 : index
    %c0_14 = arith.constant 0 : index
    %135 = vector.load %arg2[%c0_13, %c0_14] : memref<64x128xf32, #tpu.memory_space<vmem>>, vector<64x128xf32>
    %cst_15 = arith.constant dense<0.000000e+00> : vector<32x128xf32>
    %136 = tpu.matmul %134, %135, %cst_15 {dimension_numbers = #tpu.dot_dimension_numbers<[1], [0], [0], [1], [0, 0, 1, 1], [], []>, precision = #tpu.contract_precision<fp32>} : vector<32x64xf32>, vector<64x128xf32>, vector<32x128xf32> -> vector<32x128xf32>
    %c0_16 = arith.constant 0 : index
    %c0_17 = arith.constant 0 : index
    %137 = vector.load %arg3[%c0_16, %c0_17] : memref<32x128xf32, #tpu.memory_space<vmem>>, vector<32x128xf32>
    tpu.vector_store %arg3[%c0_16, %c0_17], %136 {strides = array<i32>} : memref<32x128xf32, #tpu.memory_space<vmem>>, vector<32x128xf32>,
    return
  }
  func.func @transform_0(%arg0: i32) -> (i32, i32) {
    %c0_i32 = arith.constant 0 : i32
    %c0_i32_0 = arith.constant 0 : i32
    return %arg0, %c0_i32 : i32, i32
  }
  func.func @transform_1(%arg0: i32) -> (i32, i32) {
    %c0_i32 = arith.constant 0 : i32
    %c0_i32_0 = arith.constant 0 : i32
    %c0_i32_1 = arith.constant 0 : i32
    return %c0_i32, %c0_i32_0 : i32, i32
  }
  func.func @transform_2(%arg0: i32) -> (i32, i32) {
    %c0_i32 = arith.constant 0 : i32
    %c0_i32_0 = arith.constant 0 : i32
    return %arg0, %c0_i32 : i32, i32
  }
}

</mosaic_0001>

<llo_original>
// kernel: tpu_custom_call.1
$region0: #{tpu_custom_call.1}
  #allocation0 [shape = 'u32[]', space=smem, size = 0x4, offset = 0x4, fixed_abs, tag = 'smem constant byte address 0x4 - core index']
  #allocation1 [shape = 'u32[144,128]{1,0:T(1,128)}', space=vmem, size = 0x12000, scoped, tag = 'internal scratch']
  %s0 = inlined_call_operand.vmem [shape: f32[32,24], index: 0, kind: input, shape index: {}]
  %s1 = inlined_call_operand.hbm [shape: f32[64,128], index: 1, kind: input, shape index: {}]
  %s2 = inlined_call_operand.hbm [shape: f32[32,128], index: 2, kind: output, shape index: {}]
  %s3 = sld [smem:[#allocation0]]
  $region22: #{tpu_custom_call.1} parent=0
    _
  %s5 = ssub.s32 1, %s3
  %s6 = scalar_select 0, %s5, %s3
  $region1: #{tpu_custom_call.1} parent=0
    #allocation2 [shape = 'u8[32768]{0}', space=vmem, size = 0x8000, scoped, tag = 'input window, operand 1, single buffered']
    #allocation3 [shape = 's32[1]{0}', space=sflag, size = 0x4, scoped, tag = 'scoped memory for tpu_custom_call.1']
    #allocation4 [shape = 's32[1]{0}', space=sflag, size = 0x4, scoped, tag = 'scoped memory for tpu_custom_call.1']
    #allocation5 [shape = 'u8[16384]{0}', space=vmem, size = 0x4000, scoped, tag = 'output window, operand 0, single buffered']
    %7 = vsyncpa [#allocation3], 0
    %8 = vsyncpa [#allocation4], 0
    // Predicated region
    $region2: #{tpu_custom_call.1} parent=1 // pred_check
      _
    $region3: #{tpu_custom_call.1} parent=1 // pred_check_branch
      %10 = sbr.rel (0) target = $region5
    $region4: #{tpu_custom_call.1} parent=1 // pred_region
      _
    $region5: #{tpu_custom_call.1} parent=1 // pred_fallthru
      _
    // Predicated region
    $region6: #{tpu_custom_call.1} parent=1 // pred_check
      _
    $region7: #{tpu_custom_call.1} parent=1 // pred_check_branch
      %12 = sbr.rel (0) target = $region9
    $region8: #{tpu_custom_call.1} parent=1 // pred_region
      %s14 = ssub.s32 1024, 1024
      %15 = vsyncadd [#allocation3], %s14
      %s16 = sshll.u32 [#allocation2], 4
      %s17 = int_to_ptr.vmem [resolvable:$true] %s16
      %22 = dma.hbm_to_vmem [thread:$0]  %s1, 1024, %s17, [#allocation3], 128, 128, 8
    $region9: #{tpu_custom_call.1} parent=1 // pred_fallthru
      _
    // Predicated region
    $region10: #{tpu_custom_call.1} parent=1 // pred_check
      _
    $region11: #{tpu_custom_call.1} parent=1 // pred_check_branch
      %24 = sbr.rel (0) target = $region13
    $region12: #{tpu_custom_call.1} parent=1 // pred_region
      %25 = dma.done [#allocation3], 1024
    $region13: #{tpu_custom_call.1} parent=1 // pred_fallthru
      _
    %v26 = vld [vmem:[%s0] sm:$0xff]
    %v27 = vld [vmem:[%s0 + $0x8] sm:$0xff]
    %v28 = vld [vmem:[%s0 + $0x10] sm:$0xff]
    %v29 = vld [vmem:[%s0 + $0x18] sm:$0xff]
    %v30 = vlaneseq
    %v31 = vand.u32 %v30, 127
    %v32 = vcvt.f32.s32.to.zero.pseudo %v26
    %v33 = vcvt.f32.s32.to.zero.pseudo %v27
    %v34 = vcvt.f32.s32.to.zero.pseudo %v28
    %v35 = vcvt.f32.s32.to.zero.pseudo %v29
    %40 = vrot.lane.b32.xlu0 %v26, 126
    %v41 = vpop.permute.xlu0 %40
    %42 = vrot.lane.b32.xlu0 %v27, 126
    %v43 = vpop.permute.xlu0 %42
    %44 = vrot.lane.b32.xlu0 %v28, 126
    %v45 = vpop.permute.xlu0 %44
    %46 = vrot.lane.b32.xlu0 %v29, 126
    %v47 = vpop.permute.xlu0 %46
    %vm52 = vcmask 31744
    %v53 = vsel %vm52, %v41, 0.0
    %54 = vadd.xlane.f32.xlu0 %v53
    %v55 = vpop.xlane.xlu0 %54
    %v56 = vsel %vm52, %v43, 0.0
    %57 = vadd.xlane.f32.xlu0 %v56
    %v58 = vpop.xlane.xlu0 %57
    %v59 = vsel %vm52, %v45, 0.0
    %60 = vadd.xlane.f32.xlu0 %v59
    %v61 = vpop.xlane.xlu0 %60
    %v62 = vsel %vm52, %v47, 0.0
    %63 = vadd.xlane.f32.xlu0 %v62
    %v64 = vpop.xlane.xlu0 %63
    %65 = vset.pattern.permute.xlu0 0
    %66 = vperm.xlu0 %65, %v32
    %v67 = vpop.permute.xlu0 %66
    %68 = vset.pattern.permute.xlu0 0
    %69 = vperm.xlu0 %68, %v33
    %v70 = vpop.permute.xlu0 %69
    %71 = vset.pattern.permute.xlu0 0
    %72 = vperm.xlu0 %71, %v34
    %v73 = vpop.permute.xlu0 %72
    %74 = vset.pattern.permute.xlu0 0
    %75 = vperm.xlu0 %74, %v35
    %v76 = vpop.permute.xlu0 %75
    %vm77 = vcmp.eq.s32.totalorder %v31, %v67
    %vm78 = vcmp.eq.s32.totalorder %v31, %v70
    %vm79 = vcmp.eq.s32.totalorder %v31, %v73
    %vm80 = vcmp.eq.s32.totalorder %v31, %v76
    %v81 = vsel %vm77, 1, 0
    %v82 = vsel %vm78, 1, 0
    %v83 = vsel %vm79, 1, 0
    %v84 = vsel %vm80, 1, 0
    %v85 = vcvt.s32.f32 %v81
    %v86 = vcvt.s32.f32 %v82
    %v87 = vcvt.s32.f32 %v83
    %v88 = vcvt.s32.f32 %v84
    %v89 = vadd.f32 %v85, 0.0
    %v90 = vadd.f32 %v86, 0.0
    %v91 = vadd.f32 %v87, 0.0
    %v92 = vadd.f32 %v88, 0.0
    %93 = vset.pattern.permute.xlu0 1
    %94 = vperm.xlu0 %93, %v32
    %v95 = vpop.permute.xlu0 %94
    %96 = vset.pattern.permute.xlu0 1
    %97 = vperm.xlu0 %96, %v33
    %v98 = vpop.permute.xlu0 %97
    %99 = vset.pattern.permute.xlu0 1
    %100 = vperm.xlu0 %99, %v34
    %v101 = vpop.permute.xlu0 %100
    %102 = vset.pattern.permute.xlu0 1
    %103 = vperm.xlu0 %102, %v35
    %v104 = vpop.permute.xlu0 %103
    %vm105 = vcmp.eq.s32.totalorder %v31, %v95
    %vm106 = vcmp.eq.s32.totalorder %v31, %v98
    %vm107 = vcmp.eq.s32.totalorder %v31, %v101
    %vm108 = vcmp.eq.s32.totalorder %v31, %v104
    %v109 = vsel %vm105, 1, 0
    %v110 = vsel %vm106, 1, 0
    %v111 = vsel %vm107, 1, 0
    %v112 = vsel %vm108, 1, 0
    %v113 = vcvt.s32.f32 %v109
    %v114 = vcvt.s32.f32 %v110
    %v115 = vcvt.s32.f32 %v111
    %v116 = vcvt.s32.f32 %v112
    %v117 = vadd.f32 %v89, %v113
    %v118 = vadd.f32 %v90, %v114
    %v119 = vadd.f32 %v91, %v115
    %v120 = vadd.f32 %v92, %v116
    %vm121 = vcmp.eq.s32.totalorder %v31, 8
    %v122 = vsel %vm121, %v55, 0.0
    %v123 = vsel %vm121, %v58, 0.0
    %v124 = vsel %vm121, %v61, 0.0
    %v125 = vsel %vm121, %v64, 0.0
    %v126 = vadd.f32 %v117, %v122
    %v127 = vadd.f32 %v118, %v123
    %v128 = vadd.f32 %v119, %v124
    %v129 = vadd.f32 %v120, %v125
    %vm130 = vcmp.eq.s32.totalorder %v31, 9
    %v131 = vsel %vm130, 1, 0
    %v132 = vcvt.s32.f32 %v131
    %v133 = vadd.f32 %v126, %v132
    %v134 = vadd.f32 %v127, %v132
    %v135 = vadd.f32 %v128, %v132
    %v136 = vadd.f32 %v129, %v132
    %137 = vrot.lane.b32.xlu0 %v26, 120
    %v138 = vpop.permute.xlu0 %137
    %139 = vrot.lane.b32.xlu0 %v27, 120
    %v140 = vpop.permute.xlu0 %139
    %141 = vrot.lane.b32.xlu0 %v28, 120
    %v142 = vpop.permute.xlu0 %141
    %143 = vrot.lane.b32.xlu0 %v29, 120
    %v144 = vpop.permute.xlu0 %143
    %v149 = vsel %vm52, %v138, 0.0
    %150 = vadd.xlane.f32.xlu0 %v149
    %v151 = vpop.xlane.xlu0 %150
    %v152 = vsel %vm52, %v140, 0.0
    %153 = vadd.xlane.f32.xlu0 %v152
    %v154 = vpop.xlane.xlu0 %153
    %v155 = vsel %vm52, %v142, 0.0
    %156 = vadd.xlane.f32.xlu0 %v155
    %v157 = vpop.xlane.xlu0 %156
    %v158 = vsel %vm52, %v144, 0.0
    %159 = vadd.xlane.f32.xlu0 %v158
    %v160 = vpop.xlane.xlu0 %159
    %v161 = vadd.s32 %v32, 16
    %v162 = vadd.s32 %v33, 16
    %v163 = vadd.s32 %v34, 16
    %v164 = vadd.s32 %v35, 16
    %165 = vset.pattern.permute.xlu0 6
    %166 = vperm.xlu0 %165, %v161
    %v167 = vpop.permute.xlu0 %166
    %168 = vset.pattern.permute.xlu0 6
    %169 = vperm.xlu0 %168, %v162
    %v170 = vpop.permute.xlu0 %169
    %171 = vset.pattern.permute.xlu0 6
    %172 = vperm.xlu0 %171, %v163
    %v173 = vpop.permute.xlu0 %172
    %174 = vset.pattern.permute.xlu0 6
    %175 = vperm.xlu0 %174, %v164
    %v176 = vpop.permute.xlu0 %175
    %vm177 = vcmp.eq.s32.totalorder %v31, %v167
    %vm178 = vcmp.eq.s32.totalorder %v31, %v170
    %vm179 = vcmp.eq.s32.totalorder %v31, %v173
    %vm180 = vcmp.eq.s32.totalorder %v31, %v176
    %v181 = vsel %vm177, 1, 0
    %v182 = vsel %vm178, 1, 0
    %v183 = vsel %vm179, 1, 0
    %v184 = vsel %vm180, 1, 0
    %v185 = vcvt.s32.f32 %v181
    %v186 = vcvt.s32.f32 %v182
    %v187 = vcvt.s32.f32 %v183
    %v188 = vcvt.s32.f32 %v184
    %v189 = vadd.f32 %v133, %v185
    %v190 = vadd.f32 %v134, %v186
    %v191 = vadd.f32 %v135, %v187
    %v192 = vadd.f32 %v136, %v188
    %193 = vset.pattern.permute.xlu0 7
    %194 = vperm.xlu0 %193, %v161
    %v195 = vpop.permute.xlu0 %194
    %196 = vset.pattern.permute.xlu0 7
    %197 = vperm.xlu0 %196, %v162
    %v198 = vpop.permute.xlu0 %197
    %199 = vset.pattern.permute.xlu0 7
    %200 = vperm.xlu0 %199, %v163
    %v201 = vpop.permute.xlu0 %200
    %202 = vset.pattern.permute.xlu0 7
    %203 = vperm.xlu0 %202, %v164
    %v204 = vpop.permute.xlu0 %203
    %vm205 = vcmp.eq.s32.totalorder %v31, %v195
    %vm206 = vcmp.eq.s32.totalorder %v31, %v198
    %vm207 = vcmp.eq.s32.totalorder %v31, %v201
    %vm208 = vcmp.eq.s32.totalorder %v31, %v204
    %v209 = vsel %vm205, 1, 0
    %v210 = vsel %vm206, 1, 0
    %v211 = vsel %vm207, 1, 0
    %v212 = vsel %vm208, 1, 0
    %v213 = vcvt.s32.f32 %v209
    %v214 = vcvt.s32.f32 %v210
    %v215 = vcvt.s32.f32 %v211
    %v216 = vcvt.s32.f32 %v212
    %v217 = vadd.f32 %v189, %v213
    %v218 = vadd.f32 %v190, %v214
    %v219 = vadd.f32 %v191, %v215
    %v220 = vadd.f32 %v192, %v216
    %vm221 = vcmp.eq.s32.totalorder %v31, 24
    %v222 = vsel %vm221, %v151, 0.0
    %v223 = vsel %vm221, %v154, 0.0
    %v224 = vsel %vm221, %v157, 0.0
    %v225 = vsel %vm221, %v160, 0.0
    %v226 = vadd.f32 %v217, %v222
    %v227 = vadd.f32 %v218, %v223
    %v228 = vadd.f32 %v219, %v224
    %v229 = vadd.f32 %v220, %v225
    %vm230 = vcmp.eq.s32.totalorder %v31, 25
    %v231 = vsel %vm230, 1, 0
    %v232 = vcvt.s32.f32 %v231
    %v233 = vadd.f32 %v226, %v232
    %v234 = vadd.f32 %v227, %v232
    %v235 = vadd.f32 %v228, %v232
    %v236 = vadd.f32 %v229, %v232
    %237 = vrot.lane.b32.xlu0 %v26, 114
    %v238 = vpop.permute.xlu0 %237
    %239 = vrot.lane.b32.xlu0 %v27, 114
    %v240 = vpop.permute.xlu0 %239
    %241 = vrot.lane.b32.xlu0 %v28, 114
    %v242 = vpop.permute.xlu0 %241
    %243 = vrot.lane.b32.xlu0 %v29, 114
    %v244 = vpop.permute.xlu0 %243
    %v249 = vsel %vm52, %v238, 0.0
    %250 = vadd.xlane.f32.xlu0 %v249
    %v251 = vpop.xlane.xlu0 %250
    %v252 = vsel %vm52, %v240, 0.0
    %253 = vadd.xlane.f32.xlu0 %v252
    %v254 = vpop.xlane.xlu0 %253
    %v255 = vsel %vm52, %v242, 0.0
    %256 = vadd.xlane.f32.xlu0 %v255
    %v257 = vpop.xlane.xlu0 %256
    %v258 = vsel %vm52, %v244, 0.0
    %259 = vadd.xlane.f32.xlu0 %v258
    %v260 = vpop.xlane.xlu0 %259
    %v261 = vadd.s32 %v32, 32
    %v262 = vadd.s32 %v33, 32
    %v263 = vadd.s32 %v34, 32
    %v264 = vadd.s32 %v35, 32
    %265 = vset.pattern.permute.xlu0 12
    %266 = vperm.xlu0 %265, %v261
    %v267 = vpop.permute.xlu0 %266
    %268 = vset.pattern.permute.xlu0 12
    %269 = vperm.xlu0 %268, %v262
    %v270 = vpop.permute.xlu0 %269
    %271 = vset.pattern.permute.xlu0 12
    %272 = vperm.xlu0 %271, %v263
    %v273 = vpop.permute.xlu0 %272
    %274 = vset.pattern.permute.xlu0 12
    %275 = vperm.xlu0 %274, %v264
    %v276 = vpop.permute.xlu0 %275
    %vm277 = vcmp.eq.s32.totalorder %v31, %v267
    %vm278 = vcmp.eq.s32.totalorder %v31, %v270
    %vm279 = vcmp.eq.s32.totalorder %v31, %v273
    %vm280 = vcmp.eq.s32.totalorder %v31, %v276
    %v281 = vsel %vm277, 1, 0
    %v282 = vsel %vm278, 1, 0
    %v283 = vsel %vm279, 1, 0
    %v284 = vsel %vm280, 1, 0
    %v285 = vcvt.s32.f32 %v281
    %v286 = vcvt.s32.f32 %v282
    %v287 = vcvt.s32.f32 %v283
    %v288 = vcvt.s32.f32 %v284
    %v289 = vadd.f32 %v233, %v285
    %v290 = vadd.f32 %v234, %v286
    %v291 = vadd.f32 %v235, %v287
    %v292 = vadd.f32 %v236, %v288
    %293 = vset.pattern.permute.xlu0 13
    %294 = vperm.xlu0 %293, %v261
    %v295 = vpop.permute.xlu0 %294
    %296 = vset.pattern.permute.xlu0 13
    %297 = vperm.xlu0 %296, %v262
    %v298 = vpop.permute.xlu0 %297
    %299 = vset.pattern.permute.xlu0 13
    %300 = vperm.xlu0 %299, %v263
    %v301 = vpop.permute.xlu0 %300
    %302 = vset.pattern.permute.xlu0 13
    %303 = vperm.xlu0 %302, %v264
    %v304 = vpop.permute.xlu0 %303
    %vm305 = vcmp.eq.s32.totalorder %v31, %v295
    %vm306 = vcmp.eq.s32.totalorder %v31, %v298
    %vm307 = vcmp.eq.s32.totalorder %v31, %v301
    %vm308 = vcmp.eq.s32.totalorder %v31, %v304
    %v309 = vsel %vm305, 1, 0
    %v310 = vsel %vm306, 1, 0
    %v311 = vsel %vm307, 1, 0
    %v312 = vsel %vm308, 1, 0
    %v313 = vcvt.s32.f32 %v309
    %v314 = vcvt.s32.f32 %v310
    %v315 = vcvt.s32.f32 %v311
    %v316 = vcvt.s32.f32 %v312
    %v317 = vadd.f32 %v289, %v313
    %v318 = vadd.f32 %v290, %v314
    %v319 = vadd.f32 %v291, %v315
    %v320 = vadd.f32 %v292, %v316
    %vm321 = vcmp.eq.s32.totalorder %v31, 40
    %v322 = vsel %vm321, %v251, 0.0
    %v323 = vsel %vm321, %v254, 0.0
    %v324 = vsel %vm321, %v257, 0.0
    %v325 = vsel %vm321, %v260, 0.0
    %v326 = vadd.f32 %v317, %v322
    %v327 = vadd.f32 %v318, %v323
    %v328 = vadd.f32 %v319, %v324
    %v329 = vadd.f32 %v320, %v325
    %vm330 = vcmp.eq.s32.totalorder %v31, 41
    %v331 = vsel %vm330, 1, 0
    %v332 = vcvt.s32.f32 %v331
    %v333 = vadd.f32 %v326, %v332
    %v334 = vadd.f32 %v327, %v332
    %v335 = vadd.f32 %v328, %v332
    %v336 = vadd.f32 %v329, %v332
    %337 = vrot.lane.b32.xlu0 %v26, 108
    %v338 = vpop.permute.xlu0 %337
    %339 = vrot.lane.b32.xlu0 %v27, 108
    %v340 = vpop.permute.xlu0 %339
    %341 = vrot.lane.b32.xlu0 %v28, 108
    %v342 = vpop.permute.xlu0 %341
    %343 = vrot.lane.b32.xlu0 %v29, 108
    %v344 = vpop.permute.xlu0 %343
    %v349 = vsel %vm52, %v338, 0.0
    %350 = vadd.xlane.f32.xlu0 %v349
    %v351 = vpop.xlane.xlu0 %350
    %v352 = vsel %vm52, %v340, 0.0
    %353 = vadd.xlane.f32.xlu0 %v352
    %v354 = vpop.xlane.xlu0 %353
    %v355 = vsel %vm52, %v342, 0.0
    %356 = vadd.xlane.f32.xlu0 %v355
    %v357 = vpop.xlane.xlu0 %356
    %v358 = vsel %vm52, %v344, 0.0
    %359 = vadd.xlane.f32.xlu0 %v358
    %v360 = vpop.xlane.xlu0 %359
    %v361 = vadd.s32 %v32, 48
    %v362 = vadd.s32 %v33, 48
    %v363 = vadd.s32 %v34, 48
    %v364 = vadd.s32 %v35, 48
    %365 = vset.pattern.permute.xlu0 18
    %366 = vperm.xlu0 %365, %v361
    %v367 = vpop.permute.xlu0 %366
    %368 = vset.pattern.permute.xlu0 18
    %369 = vperm.xlu0 %368, %v362
    %v370 = vpop.permute.xlu0 %369
    %371 = vset.pattern.permute.xlu0 18
    %372 = vperm.xlu0 %371, %v363
    %v373 = vpop.permute.xlu0 %372
    %374 = vset.pattern.permute.xlu0 18
    %375 = vperm.xlu0 %374, %v364
    %v376 = vpop.permute.xlu0 %375
    %vm377 = vcmp.eq.s32.totalorder %v31, %v367
    %vm378 = vcmp.eq.s32.totalorder %v31, %v370
    %vm379 = vcmp.eq.s32.totalorder %v31, %v373
    %vm380 = vcmp.eq.s32.totalorder %v31, %v376
    %v381 = vsel %vm377, 1, 0
    %v382 = vsel %vm378, 1, 0
    %v383 = vsel %vm379, 1, 0
    %v384 = vsel %vm380, 1, 0
    %v385 = vcvt.s32.f32 %v381
    %v386 = vcvt.s32.f32 %v382
    %v387 = vcvt.s32.f32 %v383
    %v388 = vcvt.s32.f32 %v384
    %v389 = vadd.f32 %v333, %v385
    %v390 = vadd.f32 %v334, %v386
    %v391 = vadd.f32 %v335, %v387
    %v392 = vadd.f32 %v336, %v388
    %393 = vset.pattern.permute.xlu0 19
    %394 = vperm.xlu0 %393, %v361
    %v395 = vpop.permute.xlu0 %394
    %396 = vset.pattern.permute.xlu0 19
    %397 = vperm.xlu0 %396, %v362
    %v398 = vpop.permute.xlu0 %397
    %399 = vset.pattern.permute.xlu0 19
    %400 = vperm.xlu0 %399, %v363
    %v401 = vpop.permute.xlu0 %400
    %402 = vset.pattern.permute.xlu0 19
    %403 = vperm.xlu0 %402, %v364
    %v404 = vpop.permute.xlu0 %403
    %vm405 = vcmp.eq.s32.totalorder %v31, %v395
    %vm406 = vcmp.eq.s32.totalorder %v31, %v398
    %vm407 = vcmp.eq.s32.totalorder %v31, %v401
    %vm408 = vcmp.eq.s32.totalorder %v31, %v404
    %v409 = vsel %vm405, 1, 0
    %v410 = vsel %vm406, 1, 0
    %v411 = vsel %vm407, 1, 0
    %v412 = vsel %vm408, 1, 0
    %v413 = vcvt.s32.f32 %v409
    %v414 = vcvt.s32.f32 %v410
    %v415 = vcvt.s32.f32 %v411
    %v416 = vcvt.s32.f32 %v412
    %v417 = vadd.f32 %v389, %v413
    %v418 = vadd.f32 %v390, %v414
    %v419 = vadd.f32 %v391, %v415
    %v420 = vadd.f32 %v392, %v416
    %vm421 = vcmp.eq.s32.totalorder %v31, 56
    %v422 = vsel %vm421, %v351, 0.0
    %v423 = vsel %vm421, %v354, 0.0
    %v424 = vsel %vm421, %v357, 0.0
    %v425 = vsel %vm421, %v360, 0.0
    %v426 = vadd.f32 %v417, %v422
    %v427 = vadd.f32 %v418, %v423
    %v428 = vadd.f32 %v419, %v424
    %v429 = vadd.f32 %v420, %v425
    %vm430 = vcmp.eq.s32.totalorder %v31, 57
    %v431 = vsel %vm430, 1, 0
    %v432 = vcvt.s32.f32 %v431
    %v433 = vadd.f32 %v426, %v432
    %v434 = vadd.f32 %v427, %v432
    %v435 = vadd.f32 %v428, %v432
    %v436 = vadd.f32 %v429, %v432
    %v437 = vld [vmem:[#allocation2] sm:$0xff]
    %v438 = vld [vmem:[#allocation2 + $0x8] sm:$0xff]
    %v439 = vld [vmem:[#allocation2 + $0x10] sm:$0xff]
    %v440 = vld [vmem:[#allocation2 + $0x18] sm:$0xff]
    %v441 = vld [vmem:[#allocation2 + $0x20] sm:$0xff]
    %v442 = vld [vmem:[#allocation2 + $0x28] sm:$0xff]
    %v443 = vld [vmem:[#allocation2 + $0x30] sm:$0xff]
    %v444 = vld [vmem:[#allocation2 + $0x38] sm:$0xff]
    %vm445 = vcmask 523264
    %v447 = vsel %vm445, %v433, 0
    %v450 = vsel %vm445, %v434, 0
    %v453 = vsel %vm445, %v435, 0
    %v456 = vsel %vm445, %v436, 0
    %458 = vmatprep.subr.mxu0 0.0
    %459 = vmatpush1.msra.mxu0 0.0
    %460 = vmatprep.subr.mxu0 0.0
    %461 = vmatpush1.msra.mxu0 0.0
    %462 = vmatprep.subr.mxu0 0.0
    %463 = vmatpush1.msra.mxu0 0.0
    %464 = vmatprep.subr.mxu0 0.0
    %465 = vmatpush1.msra.mxu0 0.0
    %466 = vmatprep.subr.mxu0 0.0
    %467 = vmatpush1.msra.mxu0 0.0
    %468 = vmatprep.subr.mxu0 0.0
    %469 = vmatpush1.msra.mxu0 0.0
    %470 = vmatprep.subr.mxu0 0.0
    %471 = vmatpush1.msra.mxu0 0.0
    %472 = vmatprep.subr.mxu0 0.0
    %473 = vmatpush1.msra.mxu0 0.0
    %474 = vmatprep.subr.mxu0 0.0
    %v475 = vand.u32 %v444, 4294901760
    %476 = vmatpush1.msra.mxu0 %v475
    %477 = vmatprep.subr.mxu0 0.0
    %v478 = vand.u32 %v443, 4294901760
    %479 = vmatpush1.msra.mxu0 %v478
    %480 = vmatprep.subr.mxu0 0.0
    %v481 = vand.u32 %v442, 4294901760
    %482 = vmatpush1.msra.mxu0 %v481
    %483 = vmatprep.subr.mxu0 0.0
    %v484 = vand.u32 %v441, 4294901760
    %485 = vmatpush1.msra.mxu0 %v484
    %486 = vmatprep.subr.mxu0 0.0
    %v487 = vand.u32 %v440, 4294901760
    %488 = vmatpush1.msra.mxu0 %v487
    %489 = vmatprep.subr.mxu0 0.0
    %v490 = vand.u32 %v439, 4294901760
    %491 = vmatpush1.msra.mxu0 %v490
    %492 = vmatprep.subr.mxu0 0.0
    %v493 = vand.u32 %v438, 4294901760
    %494 = vmatpush1.msra.mxu0 %v493
    %495 = vmatprep.subr.mxu0 0.0
    %v496 = vand.u32 %v437, 4294901760
    %497 = vmatpush1.msra.mxu0 %v496
    %498 = vmatprep.subr.mxu0 0.0
    %499 = vmatpush2.msra.mxu0 0.0
    %500 = vmatprep.subr.mxu0 0.0
    %501 = vmatpush2.msra.mxu0 0.0
    %502 = vmatprep.subr.mxu0 0.0
    %503 = vmatpush2.msra.mxu0 0.0
    %504 = vmatprep.subr.mxu0 0.0
    %505 = vmatpush2.msra.mxu0 0.0
    %506 = vmatprep.subr.mxu0 0.0
    %507 = vmatpush2.msra.mxu0 0.0
    %508 = vmatprep.subr.mxu0 0.0
    %509 = vmatpush2.msra.mxu0 0.0
    %510 = vmatprep.subr.mxu0 0.0
    %511 = vmatpush2.msra.mxu0 0.0
    %512 = vmatprep.subr.mxu0 0.0
    %513 = vmatpush2.msra.mxu0 0.0
    %514 = vmatprep.subr.mxu0 0.0
    %515 = vmatpush2.msra.mxu0 0.0
    %516 = vmatprep.subr.mxu0 0.0
    %517 = vmatpush2.msra.mxu0 0.0
    %518 = vmatprep.subr.mxu0 0.0
    %519 = vmatpush2.msra.mxu0 0.0
    %520 = vmatprep.subr.mxu0 0.0
    %521 = vmatpush2.msra.mxu0 0.0
    %522 = vmatprep.subr.mxu0 0.0
    %523 = vmatpush2.msra.mxu0 0.0
    %524 = vmatprep.subr.mxu0 0.0
    %525 = vmatpush2.msra.mxu0 0.0
    %526 = vmatprep.subr.mxu0 0.0
    %527 = vmatpush2.msra.mxu0 0.0
    %528 = vmatprep.subr.mxu0 0.0
    %529 = vmatpush2.msra.mxu0 0.0
    %530 = vmatprep.mubr.f32.mxu0 0.0
    %v531 = vand.u32 %v447, 4294901760
    %v532 = vsub.f32 %v447, %v531
    %v533 = vand.u32 %v532, 4294901760
    %v534 = vsub.f32 %v532, %v533
    %v535 = vand.u32 %v534, 4294901760
    %536 = vmatmul.mubr.f32.gmra.mxu0 %v535
    %v537 = vpop.f32.mrf.mxu0
    %v538 = vadd.f32 0.0, %v537
    %v539 = vpop.f32.mrf.mxu0
    %540 = vmatprep.mubr.f32.mxu0 0.0
    %v541 = vand.u32 %v450, 4294901760
    %v542 = vsub.f32 %v450, %v541
    %v543 = vand.u32 %v542, 4294901760
    %v544 = vsub.f32 %v542, %v543
    %v545 = vand.u32 %v544, 4294901760
    %546 = vmatmul.mubr.f32.gmra.mxu0 %v545
    %v547 = vpop.f32.mrf.mxu0
    %v548 = vadd.f32 0.0, %v547
    %v549 = vpop.f32.mrf.mxu0
    %550 = vmatprep.mubr.f32.mxu0 0.0
    %v551 = vand.u32 %v453, 4294901760
    %v552 = vsub.f32 %v453, %v551
    %v553 = vand.u32 %v552, 4294901760
    %v554 = vsub.f32 %v552, %v553
    %v555 = vand.u32 %v554, 4294901760
    %556 = vmatmul.mubr.f32.gmra.mxu0 %v555
    %v557 = vpop.f32.mrf.mxu0
    %v558 = vadd.f32 0.0, %v557
    %v559 = vpop.f32.mrf.mxu0
    %560 = vmatprep.mubr.f32.mxu0 0.0
    %v561 = vand.u32 %v456, 4294901760
    %v562 = vsub.f32 %v456, %v561
    %v563 = vand.u32 %v562, 4294901760
    %v564 = vsub.f32 %v562, %v563
    %v565 = vand.u32 %v564, 4294901760
    %566 = vmatmul.mubr.f32.gmra.mxu0 %v565
    %v567 = vpop.f32.mrf.mxu0
    %v568 = vadd.f32 0.0, %v567
    %v569 = vpop.f32.mrf.mxu0
    %570 = vdwg.mxu0
    %571 = vmatprep.subr.mxu0 0.0
    %572 = vmatpush1.msra.mxu0 0.0
    %573 = vmatprep.subr.mxu0 0.0
    %574 = vmatpush1.msra.mxu0 0.0
    %575 = vmatprep.subr.mxu0 0.0
    %576 = vmatpush1.msra.mxu0 0.0
    %577 = vmatprep.subr.mxu0 0.0
    %578 = vmatpush1.msra.mxu0 0.0
    %579 = vmatprep.subr.mxu0 0.0
    %580 = vmatpush1.msra.mxu0 0.0
    %581 = vmatprep.subr.mxu0 0.0
    %582 = vmatpush1.msra.mxu0 0.0
    %583 = vmatprep.subr.mxu0 0.0
    %584 = vmatpush1.msra.mxu0 0.0
    %585 = vmatprep.subr.mxu0 0.0
    %586 = vmatpush1.msra.mxu0 0.0
    %587 = vmatprep.subr.mxu0 0.0
    %v588 = vand.u32 %v444, 4294901760
    %v589 = vsub.f32 %v444, %v588
    %v590 = vand.u32 %v589, 4294901760
    %v591 = vsub.f32 %v589, %v590
    %v592 = vand.u32 %v591, 4294901760
    %593 = vmatpush1.msra.mxu0 %v592
    %594 = vmatprep.subr.mxu0 0.0
    %v595 = vand.u32 %v443, 4294901760
    %v596 = vsub.f32 %v443, %v595
    %v597 = vand.u32 %v596, 4294901760
    %v598 = vsub.f32 %v596, %v597
    %v599 = vand.u32 %v598, 4294901760
    %600 = vmatpush1.msra.mxu0 %v599
    %601 = vmatprep.subr.mxu0 0.0
    %v602 = vand.u32 %v442, 4294901760
    %v603 = vsub.f32 %v442, %v602
    %v604 = vand.u32 %v603, 4294901760
    %v605 = vsub.f32 %v603, %v604
    %v606 = vand.u32 %v605, 4294901760
    %607 = vmatpush1.msra.mxu0 %v606
    %608 = vmatprep.subr.mxu0 0.0
    %v609 = vand.u32 %v441, 4294901760
    %v610 = vsub.f32 %v441, %v609
    %v611 = vand.u32 %v610, 4294901760
    %v612 = vsub.f32 %v610, %v611
    %v613 = vand.u32 %v612, 4294901760
    %614 = vmatpush1.msra.mxu0 %v613
    %615 = vmatprep.subr.mxu0 0.0
    %v616 = vand.u32 %v440, 4294901760
    %v617 = vsub.f32 %v440, %v616
    %v618 = vand.u32 %v617, 4294901760
    %v619 = vsub.f32 %v617, %v618
    %v620 = vand.u32 %v619, 4294901760
    %621 = vmatpush1.msra.mxu0 %v620
    %622 = vmatprep.subr.mxu0 0.0
    %v623 = vand.u32 %v439, 4294901760
    %v624 = vsub.f32 %v439, %v623
    %v625 = vand.u32 %v624, 4294901760
    %v626 = vsub.f32 %v624, %v625
    %v627 = vand.u32 %v626, 4294901760
    %628 = vmatpush1.msra.mxu0 %v627
    %629 = vmatprep.subr.mxu0 0.0
    %v630 = vand.u32 %v438, 4294901760
    %v631 = vsub.f32 %v438, %v630
    %v632 = vand.u32 %v631, 4294901760
    %v633 = vsub.f32 %v631, %v632
    %v634 = vand.u32 %v633, 4294901760
    %635 = vmatpush1.msra.mxu0 %v634
    %636 = vmatprep.subr.mxu0 0.0
    %v637 = vand.u32 %v437, 4294901760
    %v638 = vsub.f32 %v437, %v637
    %v639 = vand.u32 %v638, 4294901760
    %v640 = vsub.f32 %v638, %v639
    %v641 = vand.u32 %v640, 4294901760
    %642 = vmatpush1.msra.mxu0 %v641
    %643 = vmatprep.subr.mxu0 0.0
    %644 = vmatpush2.msra.mxu0 0.0
    %645 = vmatprep.subr.mxu0 0.0
    %646 = vmatpush2.msra.mxu0 0.0
    %647 = vmatprep.subr.mxu0 0.0
    %648 = vmatpush2.msra.mxu0 0.0
    %649 = vmatprep.subr.mxu0 0.0
    %650 = vmatpush2.msra.mxu0 0.0
    %651 = vmatprep.subr.mxu0 0.0
    %652 = vmatpush2.msra.mxu0 0.0
    %653 = vmatprep.subr.mxu0 0.0
    %654 = vmatpush2.msra.mxu0 0.0
    %655 = vmatprep.subr.mxu0 0.0
    %656 = vmatpush2.msra.mxu0 0.0
    %657 = vmatprep.subr.mxu0 0.0
    %658 = vmatpush2.msra.mxu0 0.0
    %659 = vmatprep.subr.mxu0 0.0
    %660 = vmatpush2.msra.mxu0 0.0
    %661 = vmatprep.subr.mxu0 0.0
    %662 = vmatpush2.msra.mxu0 0.0
    %663 = vmatprep.subr.mxu0 0.0
    %664 = vmatpush2.msra.mxu0 0.0
    %665 = vmatprep.subr.mxu0 0.0
    %666 = vmatpush2.msra.mxu0 0.0
    %667 = vmatprep.subr.mxu0 0.0
    %668 = vmatpush2.msra.mxu0 0.0
    %669 = vmatprep.subr.mxu0 0.0
    %670 = vmatpush2.msra.mxu0 0.0
    %671 = vmatprep.subr.mxu0 0.0
    %672 = vmatpush2.msra.mxu0 0.0
    %673 = vmatprep.subr.mxu0 0.0
    %674 = vmatpush2.msra.mxu0 0.0
    %675 = vmatprep.mubr.f32.mxu0 0.0
    %v676 = vand.u32 %v447, 4294901760
    %677 = vmatmul.mubr.f32.gmra.mxu0 %v676
    %v678 = vpop.f32.mrf.mxu0
    %v679 = vadd.f32 %v538, %v678
    %v680 = vpop.f32.mrf.mxu0
    %681 = vmatprep.mubr.f32.mxu0 0.0
    %v682 = vand.u32 %v450, 4294901760
    %683 = vmatmul.mubr.f32.gmra.mxu0 %v682
    %v684 = vpop.f32.mrf.mxu0
    %v685 = vadd.f32 %v548, %v684
    %v686 = vpop.f32.mrf.mxu0
    %687 = vmatprep.mubr.f32.mxu0 0.0
    %v688 = vand.u32 %v453, 4294901760
    %689 = vmatmul.mubr.f32.gmra.mxu0 %v688
    %v690 = vpop.f32.mrf.mxu0
    %v691 = vadd.f32 %v558, %v690
    %v692 = vpop.f32.mrf.mxu0
    %693 = vmatprep.mubr.f32.mxu0 0.0
    %v694 = vand.u32 %v456, 4294901760
    %695 = vmatmul.mubr.f32.gmra.mxu0 %v694
    %v696 = vpop.f32.mrf.mxu0
    %v697 = vadd.f32 %v568, %v696
    %v698 = vpop.f32.mrf.mxu0
    %699 = vdwg.mxu0
    %700 = vmatprep.subr.mxu0 0.0
    %701 = vmatpush1.msra.mxu0 0.0
    %702 = vmatprep.subr.mxu0 0.0
    %703 = vmatpush1.msra.mxu0 0.0
    %704 = vmatprep.subr.mxu0 0.0
    %705 = vmatpush1.msra.mxu0 0.0
    %706 = vmatprep.subr.mxu0 0.0
    %707 = vmatpush1.msra.mxu0 0.0
    %708 = vmatprep.subr.mxu0 0.0
    %709 = vmatpush1.msra.mxu0 0.0
    %710 = vmatprep.subr.mxu0 0.0
    %711 = vmatpush1.msra.mxu0 0.0
    %712 = vmatprep.subr.mxu0 0.0
    %713 = vmatpush1.msra.mxu0 0.0
    %714 = vmatprep.subr.mxu0 0.0
    %715 = vmatpush1.msra.mxu0 0.0
    %716 = vmatprep.subr.mxu0 0.0
    %v717 = vand.u32 %v444, 4294901760
    %v718 = vsub.f32 %v444, %v717
    %719 = vmatpush1.msra.mxu0 %v718
    %720 = vmatprep.subr.mxu0 0.0
    %v721 = vand.u32 %v443, 4294901760
    %v722 = vsub.f32 %v443, %v721
    %723 = vmatpush1.msra.mxu0 %v722
    %724 = vmatprep.subr.mxu0 0.0
    %v725 = vand.u32 %v442, 4294901760
    %v726 = vsub.f32 %v442, %v725
    %727 = vmatpush1.msra.mxu0 %v726
    %728 = vmatprep.subr.mxu0 0.0
    %v729 = vand.u32 %v441, 4294901760
    %v730 = vsub.f32 %v441, %v729
    %731 = vmatpush1.msra.mxu0 %v730
    %732 = vmatprep.subr.mxu0 0.0
    %v733 = vand.u32 %v440, 4294901760
    %v734 = vsub.f32 %v440, %v733
    %735 = vmatpush1.msra.mxu0 %v734
    %736 = vmatprep.subr.mxu0 0.0
    %v737 = vand.u32 %v439, 4294901760
    %v738 = vsub.f32 %v439, %v737
    %739 = vmatpush1.msra.mxu0 %v738
    %740 = vmatprep.subr.mxu0 0.0
    %v741 = vand.u32 %v438, 4294901760
    %v742 = vsub.f32 %v438, %v741
    %743 = vmatpush1.msra.mxu0 %v742
    %744 = vmatprep.subr.mxu0 0.0
    %v745 = vand.u32 %v437, 4294901760
    %v746 = vsub.f32 %v437, %v745
    %747 = vmatpush1.msra.mxu0 %v746
    %748 = vmatprep.subr.mxu0 0.0
    %749 = vmatpush2.msra.mxu0 0.0
    %750 = vmatprep.subr.mxu0 0.0
    %751 = vmatpush2.msra.mxu0 0.0
    %752 = vmatprep.subr.mxu0 0.0
    %753 = vmatpush2.msra.mxu0 0.0
    %754 = vmatprep.subr.mxu0 0.0
    %755 = vmatpush2.msra.mxu0 0.0
    %756 = vmatprep.subr.mxu0 0.0
    %757 = vmatpush2.msra.mxu0 0.0
    %758 = vmatprep.subr.mxu0 0.0
    %759 = vmatpush2.msra.mxu0 0.0
    %760 = vmatprep.subr.mxu0 0.0
    %761 = vmatpush2.msra.mxu0 0.0
    %762 = vmatprep.subr.mxu0 0.0
    %763 = vmatpush2.msra.mxu0 0.0
    %764 = vmatprep.subr.mxu0 0.0
    %765 = vmatpush2.msra.mxu0 0.0
    %766 = vmatprep.subr.mxu0 0.0
    %767 = vmatpush2.msra.mxu0 0.0
    %768 = vmatprep.subr.mxu0 0.0
    %769 = vmatpush2.msra.mxu0 0.0
    %770 = vmatprep.subr.mxu0 0.0
    %771 = vmatpush2.msra.mxu0 0.0
    %772 = vmatprep.subr.mxu0 0.0
    %773 = vmatpush2.msra.mxu0 0.0
    %774 = vmatprep.subr.mxu0 0.0
    %775 = vmatpush2.msra.mxu0 0.0
    %776 = vmatprep.subr.mxu0 0.0
    %777 = vmatpush2.msra.mxu0 0.0
    %778 = vmatprep.subr.mxu0 0.0
    %779 = vmatpush2.msra.mxu0 0.0
    %780 = vmatprep.mubr.f32.mxu0 0.0
    %v781 = vand.u32 %v447, 4294901760
    %v782 = vsub.f32 %v447, %v781
    %783 = vmatmul.mubr.f32.gmra.mxu0 %v782
    %v784 = vpop.f32.mrf.mxu0
    %v785 = vadd.f32 %v679, %v784
    %v786 = vpop.f32.mrf.mxu0
    %787 = vmatprep.mubr.f32.mxu0 0.0
    %v788 = vand.u32 %v450, 4294901760
    %v789 = vsub.f32 %v450, %v788
    %790 = vmatmul.mubr.f32.gmra.mxu0 %v789
    %v791 = vpop.f32.mrf.mxu0
    %v792 = vadd.f32 %v685, %v791
    %v793 = vpop.f32.mrf.mxu0
    %794 = vmatprep.mubr.f32.mxu0 0.0
    %v795 = vand.u32 %v453, 4294901760
    %v796 = vsub.f32 %v453, %v795
    %797 = vmatmul.mubr.f32.gmra.mxu0 %v796
    %v798 = vpop.f32.mrf.mxu0
    %v799 = vadd.f32 %v691, %v798
    %v800 = vpop.f32.mrf.mxu0
    %801 = vmatprep.mubr.f32.mxu0 0.0
    %v802 = vand.u32 %v456, 4294901760
    %v803 = vsub.f32 %v456, %v802
    %804 = vmatmul.mubr.f32.gmra.mxu0 %v803
    %v805 = vpop.f32.mrf.mxu0
    %v806 = vadd.f32 %v697, %v805
    %v807 = vpop.f32.mrf.mxu0
    %808 = vdwg.mxu0
    %809 = vmatprep.subr.mxu0 0.0
    %810 = vmatpush1.msra.mxu0 0.0
    %811 = vmatprep.subr.mxu0 0.0
    %812 = vmatpush1.msra.mxu0 0.0
    %813 = vmatprep.subr.mxu0 0.0
    %814 = vmatpush1.msra.mxu0 0.0
    %815 = vmatprep.subr.mxu0 0.0
    %816 = vmatpush1.msra.mxu0 0.0
    %817 = vmatprep.subr.mxu0 0.0
    %818 = vmatpush1.msra.mxu0 0.0
    %819 = vmatprep.subr.mxu0 0.0
    %820 = vmatpush1.msra.mxu0 0.0
    %821 = vmatprep.subr.mxu0 0.0
    %822 = vmatpush1.msra.mxu0 0.0
    %823 = vmatprep.subr.mxu0 0.0
    %824 = vmatpush1.msra.mxu0 0.0
    %825 = vmatprep.subr.mxu0 0.0
    %v826 = vand.u32 %v444, 4294901760
    %827 = vmatpush1.msra.mxu0 %v826
    %828 = vmatprep.subr.mxu0 0.0
    %v829 = vand.u32 %v443, 4294901760
    %830 = vmatpush1.msra.mxu0 %v829
    %831 = vmatprep.subr.mxu0 0.0
    %v832 = vand.u32 %v442, 4294901760
    %833 = vmatpush1.msra.mxu0 %v832
    %834 = vmatprep.subr.mxu0 0.0
    %v835 = vand.u32 %v441, 4294901760
    %836 = vmatpush1.msra.mxu0 %v835
    %837 = vmatprep.subr.mxu0 0.0
    %v838 = vand.u32 %v440, 4294901760
    %839 = vmatpush1.msra.mxu0 %v838
    %840 = vmatprep.subr.mxu0 0.0
    %v841 = vand.u32 %v439, 4294901760
    %842 = vmatpush1.msra.mxu0 %v841
    %843 = vmatprep.subr.mxu0 0.0
    %v844 = vand.u32 %v438, 4294901760
    %845 = vmatpush1.msra.mxu0 %v844
    %846 = vmatprep.subr.mxu0 0.0
    %v847 = vand.u32 %v437, 4294901760
    %848 = vmatpush1.msra.mxu0 %v847
    %849 = vmatprep.subr.mxu0 0.0
    %850 = vmatpush2.msra.mxu0 0.0
    %851 = vmatprep.subr.mxu0 0.0
    %852 = vmatpush2.msra.mxu0 0.0
    %853 = vmatprep.subr.mxu0 0.0
    %854 = vmatpush2.msra.mxu0 0.0
    %855 = vmatprep.subr.mxu0 0.0
    %856 = vmatpush2.msra.mxu0 0.0
    %857 = vmatprep.subr.mxu0 0.0
    %858 = vmatpush2.msra.mxu0 0.0
    %859 = vmatprep.subr.mxu0 0.0
    %860 = vmatpush2.msra.mxu0 0.0
    %861 = vmatprep.subr.mxu0 0.0
    %862 = vmatpush2.msra.mxu0 0.0
    %863 = vmatprep.subr.mxu0 0.0
    %864 = vmatpush2.msra.mxu0 0.0
    %865 = vmatprep.subr.mxu0 0.0
    %866 = vmatpush2.msra.mxu0 0.0
    %867 = vmatprep.subr.mxu0 0.0
    %868 = vmatpush2.msra.mxu0 0.0
    %869 = vmatprep.subr.mxu0 0.0
    %870 = vmatpush2.msra.mxu0 0.0
    %871 = vmatprep.subr.mxu0 0.0
    %872 = vmatpush2.msra.mxu0 0.0
    %873 = vmatprep.subr.mxu0 0.0
    %874 = vmatpush2.msra.mxu0 0.0
    %875 = vmatprep.subr.mxu0 0.0
    %876 = vmatpush2.msra.mxu0 0.0
    %877 = vmatprep.subr.mxu0 0.0
    %878 = vmatpush2.msra.mxu0 0.0
    %879 = vmatprep.subr.mxu0 0.0
    %880 = vmatpush2.msra.mxu0 0.0
    %881 = vmatprep.mubr.f32.mxu0 0.0
    %v882 = vand.u32 %v447, 4294901760
    %v883 = vsub.f32 %v447, %v882
    %v884 = vand.u32 %v883, 4294901760
    %885 = vmatmul.mubr.f32.gmra.mxu0 %v884
    %v886 = vpop.f32.mrf.mxu0
    %v887 = vadd.f32 %v785, %v886
    %v888 = vpop.f32.mrf.mxu0
    %889 = vmatprep.mubr.f32.mxu0 0.0
    %v890 = vand.u32 %v450, 4294901760
    %v891 = vsub.f32 %v450, %v890
    %v892 = vand.u32 %v891, 4294901760
    %893 = vmatmul.mubr.f32.gmra.mxu0 %v892
    %v894 = vpop.f32.mrf.mxu0
    %v895 = vadd.f32 %v792, %v894
    %v896 = vpop.f32.mrf.mxu0
    %897 = vmatprep.mubr.f32.mxu0 0.0
    %v898 = vand.u32 %v453, 4294901760
    %v899 = vsub.f32 %v453, %v898
    %v900 = vand.u32 %v899, 4294901760
    %901 = vmatmul.mubr.f32.gmra.mxu0 %v900
    %v902 = vpop.f32.mrf.mxu0
    %v903 = vadd.f32 %v799, %v902
    %v904 = vpop.f32.mrf.mxu0
    %905 = vmatprep.mubr.f32.mxu0 0.0
    %v906 = vand.u32 %v456, 4294901760
    %v907 = vsub.f32 %v456, %v906
    %v908 = vand.u32 %v907, 4294901760
    %909 = vmatmul.mubr.f32.gmra.mxu0 %v908
    %v910 = vpop.f32.mrf.mxu0
    %v911 = vadd.f32 %v806, %v910
    %v912 = vpop.f32.mrf.mxu0
    %913 = vdwg.mxu0
    %914 = vmatprep.subr.mxu0 0.0
    %915 = vmatpush1.msra.mxu0 0.0
    %916 = vmatprep.subr.mxu0 0.0
    %917 = vmatpush1.msra.mxu0 0.0
    %918 = vmatprep.subr.mxu0 0.0
    %919 = vmatpush1.msra.mxu0 0.0
    %920 = vmatprep.subr.mxu0 0.0
    %921 = vmatpush1.msra.mxu0 0.0
    %922 = vmatprep.subr.mxu0 0.0
    %923 = vmatpush1.msra.mxu0 0.0
    %924 = vmatprep.subr.mxu0 0.0
    %925 = vmatpush1.msra.mxu0 0.0
    %926 = vmatprep.subr.mxu0 0.0
    %927 = vmatpush1.msra.mxu0 0.0
    %928 = vmatprep.subr.mxu0 0.0
    %929 = vmatpush1.msra.mxu0 0.0
    %930 = vmatprep.subr.mxu0 0.0
    %v931 = vand.u32 %v444, 4294901760
    %v932 = vsub.f32 %v444, %v931
    %v933 = vand.u32 %v932, 4294901760
    %934 = vmatpush1.msra.mxu0 %v933
    %935 = vmatprep.subr.mxu0 0.0
    %v936 = vand.u32 %v443, 4294901760
    %v937 = vsub.f32 %v443, %v936
    %v938 = vand.u32 %v937, 4294901760
    %939 = vmatpush1.msra.mxu0 %v938
    %940 = vmatprep.subr.mxu0 0.0
    %v941 = vand.u32 %v442, 4294901760
    %v942 = vsub.f32 %v442, %v941
    %v943 = vand.u32 %v942, 4294901760
    %944 = vmatpush1.msra.mxu0 %v943
    %945 = vmatprep.subr.mxu0 0.0
    %v946 = vand.u32 %v441, 4294901760
    %v947 = vsub.f32 %v441, %v946
    %v948 = vand.u32 %v947, 4294901760
    %949 = vmatpush1.msra.mxu0 %v948
    %950 = vmatprep.subr.mxu0 0.0
    %v951 = vand.u32 %v440, 4294901760
    %v952 = vsub.f32 %v440, %v951
    %v953 = vand.u32 %v952, 4294901760
    %954 = vmatpush1.msra.mxu0 %v953
    %955 = vmatprep.subr.mxu0 0.0
    %v956 = vand.u32 %v439, 4294901760
    %v957 = vsub.f32 %v439, %v956
    %v958 = vand.u32 %v957, 4294901760
    %959 = vmatpush1.msra.mxu0 %v958
    %960 = vmatprep.subr.mxu0 0.0
    %v961 = vand.u32 %v438, 4294901760
    %v962 = vsub.f32 %v438, %v961
    %v963 = vand.u32 %v962, 4294901760
    %964 = vmatpush1.msra.mxu0 %v963
    %965 = vmatprep.subr.mxu0 0.0
    %v966 = vand.u32 %v437, 4294901760
    %v967 = vsub.f32 %v437, %v966
    %v968 = vand.u32 %v967, 4294901760
    %969 = vmatpush1.msra.mxu0 %v968
    %970 = vmatprep.subr.mxu0 0.0
    %971 = vmatpush2.msra.mxu0 0.0
    %972 = vmatprep.subr.mxu0 0.0
    %973 = vmatpush2.msra.mxu0 0.0
    %974 = vmatprep.subr.mxu0 0.0
    %975 = vmatpush2.msra.mxu0 0.0
    %976 = vmatprep.subr.mxu0 0.0
    %977 = vmatpush2.msra.mxu0 0.0
    %978 = vmatprep.subr.mxu0 0.0
    %979 = vmatpush2.msra.mxu0 0.0
    %980 = vmatprep.subr.mxu0 0.0
    %981 = vmatpush2.msra.mxu0 0.0
    %982 = vmatprep.subr.mxu0 0.0
    %983 = vmatpush2.msra.mxu0 0.0
    %984 = vmatprep.subr.mxu0 0.0
    %985 = vmatpush2.msra.mxu0 0.0
    %986 = vmatprep.subr.mxu0 0.0
    %987 = vmatpush2.msra.mxu0 0.0
    %988 = vmatprep.subr.mxu0 0.0
    %989 = vmatpush2.msra.mxu0 0.0
    %990 = vmatprep.subr.mxu0 0.0
    %991 = vmatpush2.msra.mxu0 0.0
    %992 = vmatprep.subr.mxu0 0.0
    %993 = vmatpush2.msra.mxu0 0.0
    %994 = vmatprep.subr.mxu0 0.0
    %995 = vmatpush2.msra.mxu0 0.0
    %996 = vmatprep.subr.mxu0 0.0
    %997 = vmatpush2.msra.mxu0 0.0
    %998 = vmatprep.subr.mxu0 0.0
    %999 = vmatpush2.msra.mxu0 0.0
    %1000 = vmatprep.subr.mxu0 0.0
    %1001 = vmatpush2.msra.mxu0 0.0
    %1002 = vmatprep.mubr.f32.mxu0 0.0
    %v1003 = vand.u32 %v447, 4294901760
    %1004 = vmatmul.mubr.f32.gmra.mxu0 %v1003
    %v1005 = vpop.f32.mrf.mxu0
    %v1006 = vadd.f32 %v887, %v1005
    %v1007 = vpop.f32.mrf.mxu0
    %1008 = vmatprep.mubr.f32.mxu0 0.0
    %v1009 = vand.u32 %v450, 4294901760
    %1010 = vmatmul.mubr.f32.gmra.mxu0 %v1009
    %v1011 = vpop.f32.mrf.mxu0
    %v1012 = vadd.f32 %v895, %v1011
    %v1013 = vpop.f32.mrf.mxu0
    %1014 = vmatprep.mubr.f32.mxu0 0.0
    %v1015 = vand.u32 %v453, 4294901760
    %1016 = vmatmul.mubr.f32.gmra.mxu0 %v1015
    %v1017 = vpop.f32.mrf.mxu0
    %v1018 = vadd.f32 %v903, %v1017
    %v1019 = vpop.f32.mrf.mxu0
    %1020 = vmatprep.mubr.f32.mxu0 0.0
    %v1021 = vand.u32 %v456, 4294901760
    %1022 = vmatmul.mubr.f32.gmra.mxu0 %v1021
    %v1023 = vpop.f32.mrf.mxu0
    %v1024 = vadd.f32 %v911, %v1023
    %v1025 = vpop.f32.mrf.mxu0
    %1026 = vdwg.mxu0
    %1027 = vmatprep.subr.mxu0 0.0
    %1028 = vmatpush1.msra.mxu0 0.0
    %1029 = vmatprep.subr.mxu0 0.0
    %1030 = vmatpush1.msra.mxu0 0.0
    %1031 = vmatprep.subr.mxu0 0.0
    %1032 = vmatpush1.msra.mxu0 0.0
    %1033 = vmatprep.subr.mxu0 0.0
    %1034 = vmatpush1.msra.mxu0 0.0
    %1035 = vmatprep.subr.mxu0 0.0
    %1036 = vmatpush1.msra.mxu0 0.0
    %1037 = vmatprep.subr.mxu0 0.0
    %1038 = vmatpush1.msra.mxu0 0.0
    %1039 = vmatprep.subr.mxu0 0.0
    %1040 = vmatpush1.msra.mxu0 0.0
    %1041 = vmatprep.subr.mxu0 0.0
    %1042 = vmatpush1.msra.mxu0 0.0
    %1043 = vmatprep.subr.mxu0 0.0
    %v1044 = vand.u32 %v444, 4294901760
    %1045 = vmatpush1.msra.mxu0 %v1044
    %1046 = vmatprep.subr.mxu0 0.0
    %v1047 = vand.u32 %v443, 4294901760
    %1048 = vmatpush1.msra.mxu0 %v1047
    %1049 = vmatprep.subr.mxu0 0.0
    %v1050 = vand.u32 %v442, 4294901760
    %1051 = vmatpush1.msra.mxu0 %v1050
    %1052 = vmatprep.subr.mxu0 0.0
    %v1053 = vand.u32 %v441, 4294901760
    %1054 = vmatpush1.msra.mxu0 %v1053
    %1055 = vmatprep.subr.mxu0 0.0
    %v1056 = vand.u32 %v440, 4294901760
    %1057 = vmatpush1.msra.mxu0 %v1056
    %1058 = vmatprep.subr.mxu0 0.0
    %v1059 = vand.u32 %v439, 4294901760
    %1060 = vmatpush1.msra.mxu0 %v1059
    %1061 = vmatprep.subr.mxu0 0.0
    %v1062 = vand.u32 %v438, 4294901760
    %1063 = vmatpush1.msra.mxu0 %v1062
    %1064 = vmatprep.subr.mxu0 0.0
    %v1065 = vand.u32 %v437, 4294901760
    %1066 = vmatpush1.msra.mxu0 %v1065
    %1067 = vmatprep.subr.mxu0 0.0
    %1068 = vmatpush2.msra.mxu0 0.0
    %1069 = vmatprep.subr.mxu0 0.0
    %1070 = vmatpush2.msra.mxu0 0.0
    %1071 = vmatprep.subr.mxu0 0.0
    %1072 = vmatpush2.msra.mxu0 0.0
    %1073 = vmatprep.subr.mxu0 0.0
    %1074 = vmatpush2.msra.mxu0 0.0
    %1075 = vmatprep.subr.mxu0 0.0
    %1076 = vmatpush2.msra.mxu0 0.0
    %1077 = vmatprep.subr.mxu0 0.0
    %1078 = vmatpush2.msra.mxu0 0.0
    %1079 = vmatprep.subr.mxu0 0.0
    %1080 = vmatpush2.msra.mxu0 0.0
    %1081 = vmatprep.subr.mxu0 0.0
    %1082 = vmatpush2.msra.mxu0 0.0
    %1083 = vmatprep.subr.mxu0 0.0
    %1084 = vmatpush2.msra.mxu0 0.0
    %1085 = vmatprep.subr.mxu0 0.0
    %1086 = vmatpush2.msra.mxu0 0.0
    %1087 = vmatprep.subr.mxu0 0.0
    %1088 = vmatpush2.msra.mxu0 0.0
    %1089 = vmatprep.subr.mxu0 0.0
    %1090 = vmatpush2.msra.mxu0 0.0
    %1091 = vmatprep.subr.mxu0 0.0
    %1092 = vmatpush2.msra.mxu0 0.0
    %1093 = vmatprep.subr.mxu0 0.0
    %1094 = vmatpush2.msra.mxu0 0.0
    %1095 = vmatprep.subr.mxu0 0.0
    %1096 = vmatpush2.msra.mxu0 0.0
    %1097 = vmatprep.subr.mxu0 0.0
    %1098 = vmatpush2.msra.mxu0 0.0
    %1099 = vmatprep.mubr.f32.mxu0 0.0
    %v1100 = vand.u32 %v447, 4294901760
    %1101 = vmatmul.mubr.f32.gmra.mxu0 %v1100
    %v1102 = vpop.f32.mrf.mxu0
    %v1103 = vadd.f32 %v1006, %v1102
    %v1104 = vpop.f32.mrf.mxu0
    %1105 = vmatprep.mubr.f32.mxu0 0.0
    %v1106 = vand.u32 %v450, 4294901760
    %1107 = vmatmul.mubr.f32.gmra.mxu0 %v1106
    %v1108 = vpop.f32.mrf.mxu0
    %v1109 = vadd.f32 %v1012, %v1108
    %v1110 = vpop.f32.mrf.mxu0
    %1111 = vmatprep.mubr.f32.mxu0 0.0
    %v1112 = vand.u32 %v453, 4294901760
    %1113 = vmatmul.mubr.f32.gmra.mxu0 %v1112
    %v1114 = vpop.f32.mrf.mxu0
    %v1115 = vadd.f32 %v1018, %v1114
    %v1116 = vpop.f32.mrf.mxu0
    %1117 = vmatprep.mubr.f32.mxu0 0.0
    %v1118 = vand.u32 %v456, 4294901760
    %1119 = vmatmul.mubr.f32.gmra.mxu0 %v1118
    %v1120 = vpop.f32.mrf.mxu0
    %v1121 = vadd.f32 %v1024, %v1120
    %v1122 = vpop.f32.mrf.mxu0
    %1123 = vdwg.mxu0
    %1124 = vst [vmem:[#allocation5] sm:$0xff] %v1103
    %1125 = vst [vmem:[#allocation5 + $0x8] sm:$0xff] %v1109
    %1126 = vst [vmem:[#allocation5 + $0x10] sm:$0xff] %v1115
    %1127 = vst [vmem:[#allocation5 + $0x18] sm:$0xff] %v1121
    // Predicated region
    $region14: #{tpu_custom_call.1} parent=1 // pred_check
      _
    $region15: #{tpu_custom_call.1} parent=1 // pred_check_branch
      %1129 = sbr.rel (0) target = $region17
    $region16: #{tpu_custom_call.1} parent=1 // pred_region
      %s1131 = ssub.s32 512, 512
      %1132 = vsyncadd [#allocation4], %s1131
      %s1133 = sshll.u32 [#allocation5], 4
      %s1134 = int_to_ptr.vmem [resolvable:$true] %s1133
      %1139 = dma.vmem_to_hbm [thread:$0]  %s1134, 512, %s2, [#allocation4], 128, 128, 8
    $region17: #{tpu_custom_call.1} parent=1 // pred_fallthru
      _
    // Predicated region
    $region18: #{tpu_custom_call.1} parent=1 // pred_check
      _
    $region19: #{tpu_custom_call.1} parent=1 // pred_check_branch
      %1141 = sbr.rel (0) target = $region21
    $region20: #{tpu_custom_call.1} parent=1 // pred_region
      %1142 = dma.done [#allocation4], 512
    $region21: #{tpu_custom_call.1} parent=1 // pred_fallthru
      _
    %1143 = vsyncpa [#allocation3], 1
    %1144 = vsyncpa [#allocation4], 1

</llo_original>
